<compile_context>
chip_gen: v5e
topology: v5e:2x2
jax: 0.10.0
libtpu: 0.0.40
codegen_flags: <defaults>
</compile_context>

<pallas_src>
import jax
import jax.numpy as jnp
from jax.experimental import pallas as pl
from jax.experimental.pallas import tpu as pltpu


def _round_up(n, m):
    return ((n + m - 1) // m) * m


def _default_vmem_limit_bytes():
    """~85% of chip VMEM, capped at 100 MiB (safe on v5e/v6e 128 MiB and v7x 64 MiB)."""
    try:
        cap = int(pltpu.get_tpu_info().vmem_capacity_bytes)
    except Exception:
        cap = 64 * 1024 * 1024
    return min(int(cap * 0.85), 100 * 1024 * 1024)


def swiglu_kernel(x_ref, w_ref, b_ref, o_ref, acc_ref):
    # x_ref: (tm, tk)  w_ref: (tk, 2D)  b_ref: (1, 2D)  o_ref: (tm, D)
    # acc_ref: (tm, 2D) f32 accumulator, resident across the K grid axis.
    k = pl.program_id(1)

    @pl.when(k == 0)
    def _():
        acc_ref[...] = jnp.zeros_like(acc_ref)

    # Single fused matmul for both projections; accumulate in f32 on the MXU.
    acc_ref[...] += jnp.dot(x_ref[...], w_ref[...],
                            preferred_element_type=jnp.float32)

    @pl.when(k == pl.num_programs(1) - 1)
    def _():
        d = o_ref.shape[-1]
        y = acc_ref[...] + b_ref[...].astype(jnp.float32)
        gate = y[:, :d]
        val = y[:, d:]
        # SiLU(gate) * val, all in f32 (EUP sigmoid), cast only at the store.
        o_ref[...] = (gate * jax.nn.sigmoid(gate) * val).astype(o_ref.dtype)


def prepare_swiglu_params(weight, bias=None):
    """One-time parameter prep (do at load time, NOT per forward call).

    weight: (2*dim, dim) in PyTorch nn.Linear layout; bias: (2*dim,) or None.
    Returns w_fused: (dim, 2*dim) = [W_g^T | W_v^T], b_fused: (1, 2*dim) f32.
    """
    two_dim, dim = weight.shape
    assert two_dim == 2 * dim
    w_fused = jnp.concatenate([weight[:dim, :].T, weight[dim:, :].T], axis=1)
    if bias is None:
        b_fused = jnp.zeros((1, two_dim), jnp.float32)
    else:
        b_fused = bias.reshape(1, two_dim).astype(jnp.float32)
    return w_fused, b_fused


def swiglu(x, w_fused, b_fused, *, tm=256, tk=512, compute_dtype=None,
           vmem_limit_bytes=None):
    """x: (..., dim); w_fused: (dim, 2*dim); b_fused: (1, 2*dim)."""
    dim2 = w_fused.shape[1]
    dim = dim2 // 2
    assert x.shape[-1] == dim and w_fused.shape[0] == dim

    lead = x.shape[:-1]
    x2d = x.reshape(-1, dim)
    M = x2d.shape[0]

    # Row tile: MXU-friendly 256 by default, clamped (8-aligned) for small M;
    # ragged M is handled by zero-padding, not an assert.
    tm_eff = _round_up(min(tm, _round_up(max(M, 1), 8)), 8)
    m_pad = _round_up(M, tm_eff)
    if m_pad != M:
        x2d = jnp.pad(x2d, ((0, m_pad - M), (0, 0)))

    # K tile: tile the contraction dim when D is large so weights need not be
    # fully VMEM-resident (keeps v7x's 64 MiB budget happy at big hidden sizes).
    tk_eff = dim
    if dim > tk:
        for cand in (tk, 256, 128):
            if dim % cand == 0:
                tk_eff = cand
                break

    if compute_dtype is not None:
        # bf16 matmul inputs for v6e/v7x MXU rate; accumulation stays f32.
        x2d = x2d.astype(compute_dtype)
        w_fused = w_fused.astype(compute_dtype)

    if vmem_limit_bytes is None:
        vmem_limit_bytes = _default_vmem_limit_bytes()

    out = pl.pallas_call(
        swiglu_kernel,
        out_shape=jax.ShapeDtypeStruct((m_pad, dim), x.dtype),
        grid_spec=pltpu.PrefetchScalarGridSpec(
            num_scalar_prefetch=0,
            grid=(m_pad // tm_eff, dim // tk_eff),   # K axis last
            in_specs=[
                pl.BlockSpec((tm_eff, tk_eff), lambda i, k: (i, k)),   # x rows
                pl.BlockSpec((tk_eff, dim2), lambda i, k: (k, 0)),     # fused W
                pl.BlockSpec((1, dim2), lambda i, k: (0, 0)),          # fused bias
            ],
            out_specs=pl.BlockSpec((tm_eff, dim), lambda i, k: (i, 0)),
            scratch_shapes=[pltpu.VMEM((tm_eff, dim2), jnp.float32)],
        ),
        compiler_params=pltpu.CompilerParams(
            dimension_semantics=("parallel", "arbitrary"),
            vmem_limit_bytes=vmem_limit_bytes,
        ),
    )(x2d, w_fused, b_fused)

    if m_pad != M:
        out = out[:M]
    return out.reshape(*lead, dim)


def xavier_uniform(key, shape, dtype=jnp.float32):
    fan_out, fan_in = shape  # nn.Linear weight is (out_features, in_features)
    limit = (6.0 / (fan_in + fan_out)) ** 0.5
    return jax.random.uniform(key, shape, dtype, minval=-limit, maxval=limit)


if __name__ == "__main__":
    key = jax.random.PRNGKey(0)
    k_x, k_w = jax.random.split(key)

    batch, seq, dim = 2, 8, 32
    x = jax.random.normal(k_x, (batch, seq, dim), jnp.float32)

    # Deterministic parameter init matching the module's __init__.
    weight = xavier_uniform(k_w, (2 * dim, dim))   # nn.Linear(dim, 2*dim).weight
    bias = jnp.zeros((2 * dim,), jnp.float32)      # zero-initialized bias

    # One-time parameter fusion/transpose (load-time, not per call).
    w_fused, b_fused = prepare_swiglu_params(weight, bias)

    y = swiglu(x, w_fused, b_fused)
    jax.block_until_ready(y)

    # Pure-JAX reference check.
    proj = x @ weight.T + bias
    xw, xv = proj[..., :dim], proj[..., dim:]
    ref = jax.nn.silu(xw) * xv
    assert y.shape == (batch, seq, dim)
    assert jnp.allclose(y, ref, atol=1e-5, rtol=1e-5)

    print("KERNEL_OK")
</pallas_src>

<mosaic_0001>
module attributes {stable_mosaic.version = 11 : i64} {
  func.func @swiglu_kernel(%arg0: i32, %arg1: i32, %arg2: memref<16x32xf32, #tpu.memory_space<vmem>>, %arg3: memref<32x64xf32, #tpu.memory_space<vmem>>, %arg4: memref<1x64xf32, #tpu.memory_space<vmem>>, %arg5: memref<16x32xf32, #tpu.memory_space<vmem>>, %arg6: memref<16x64xf32, #tpu.memory_space<vmem>>) attributes {dimension_semantics = [#tpu.dimension_semantics<parallel>, #tpu.dimension_semantics<arbitrary>], iteration_bounds = array<i64: 1, 1>, scalar_prefetch = 0 : i64, scratch_operands = 1 : i64, tpu.core_type = #tpu.core_type<tc>, window_params = [{transform_indices = @transform_0, window_bounds = array<i64: 16, 32>}, {transform_indices = @transform_1, window_bounds = array<i64: 32, 64>}, {pipeline_mode = #tpu.pipeline_mode<synchronous>, transform_indices = @transform_2, window_bounds = array<i64: 1, 64>}, {transform_indices = @transform_3, window_bounds = array<i64: 16, 32>}]} {
    %c0_i32 = arith.constant 0 : i32
    %0 = arith.cmpi eq, %arg1, %c0_i32 : i32
    %1 = arith.extui %0 : i1 to i32
    %c0_i32_0 = arith.constant 0 : i32
    %2 = arith.cmpi ne, %1, %c0_i32_0 : i32
    scf.if %2 {
      %cst_10 = arith.constant 0.000000e+00 : f32
      %12 = vector.broadcast %cst_10 : f32 to vector<16x64xf32>
      %c0_11 = arith.constant 0 : index
      %c0_12 = arith.constant 0 : index
      %13 = vector.load %arg6[%c0_11, %c0_12] : memref<16x64xf32, #tpu.memory_space<vmem>>, vector<16x64xf32>
      tpu.vector_store %arg6[%c0_11, %c0_12], %12 {strides = array<i32>} : memref<16x64xf32, #tpu.memory_space<vmem>>, vector<16x64xf32>,
    } else {
    }
    %c0 = arith.constant 0 : index
    %c0_1 = arith.constant 0 : index
    %3 = vector.load %arg6[%c0, %c0_1] : memref<16x64xf32, #tpu.memory_space<vmem>>, vector<16x64xf32>
    %c0_2 = arith.constant 0 : index
    %c0_3 = arith.constant 0 : index
    %4 = vector.load %arg2[%c0_2, %c0_3] : memref<16x32xf32, #tpu.memory_space<vmem>>, vector<16x32xf32>
    %c0_4 = arith.constant 0 : index
    %c0_5 = arith.constant 0 : index
    %5 = vector.load %arg3[%c0_4, %c0_5] : memref<32x64xf32, #tpu.memory_space<vmem>>, vector<32x64xf32>
    %cst = arith.constant dense<0.000000e+00> : vector<16x64xf32>
    %6 = tpu.matmul %4, %5, %cst {dimension_numbers = #tpu.dot_dimension_numbers<[1], [0], [0], [1], [0, 0, 1, 1], [], []>} : vector<16x32xf32>, vector<32x64xf32>, vector<16x64xf32> -> vector<16x64xf32>
    %7 = arith.addf %3, %6 : vector<16x64xf32>
    %c0_6 = arith.constant 0 : index
    %c0_7 = arith.constant 0 : index
    %8 = vector.load %arg6[%c0_6, %c0_7] : memref<16x64xf32, #tpu.memory_space<vmem>>, vector<16x64xf32>
    tpu.vector_store %arg6[%c0_6, %c0_7], %7 {strides = array<i32>} : memref<16x64xf32, #tpu.memory_space<vmem>>, vector<16x64xf32>,
    %c0_i32_8 = arith.constant 0 : i32
    %9 = arith.cmpi eq, %arg1, %c0_i32_8 : i32
    %10 = arith.extui %9 : i1 to i32
    %c0_i32_9 = arith.constant 0 : i32
    %11 = arith.cmpi ne, %10, %c0_i32_9 : i32
    scf.if %11 {
      %c0_10 = arith.constant 0 : index
      %c0_11 = arith.constant 0 : index
      %12 = vector.load %arg6[%c0_10, %c0_11] : memref<16x64xf32, #tpu.memory_space<vmem>>, vector<16x64xf32>
      %c0_12 = arith.constant 0 : index
      %c0_13 = arith.constant 0 : index
      %13 = vector.load %arg4[%c0_12, %c0_13] : memref<1x64xf32, #tpu.memory_space<vmem>>, vector<1x64xf32>
      %14 = vector.broadcast %13 : vector<1x64xf32> to vector<16x64xf32>
      %15 = arith.addf %12, %14 : vector<16x64xf32>
      %16 = vector.extract_strided_slice %15 {offsets = [0, 0], sizes = [16, 32], strides = [1, 1]} : vector<16x64xf32> to vector<16x32xf32>
      %17 = vector.extract_strided_slice %15 {offsets = [0, 32], sizes = [16, 32], strides = [1, 1]} : vector<16x64xf32> to vector<16x32xf32>
      %18 = arith.negf %16 : vector<16x32xf32>
      %19 = math.exp %18 : vector<16x32xf32>
      %cst_14 = arith.constant 1.000000e+00 : f32
      %20 = vector.broadcast %cst_14 : f32 to vector<16x32xf32>
      %21 = arith.addf %20, %19 : vector<16x32xf32>
      %22 = arith.divf %20, %21 : vector<16x32xf32>
      %23 = arith.mulf %16, %22 : vector<16x32xf32>
      %24 = arith.mulf %23, %17 : vector<16x32xf32>
      %c0_15 = arith.constant 0 : index
      %c0_16 = arith.constant 0 : index
      %25 = vector.load %arg5[%c0_15, %c0_16] : memref<16x32xf32, #tpu.memory_space<vmem>>, vector<16x32xf32>
      tpu.vector_store %arg5[%c0_15, %c0_16], %24 {strides = array<i32>} : memref<16x32xf32, #tpu.memory_space<vmem>>, vector<16x32xf32>,
    } else {
    }
    return
  }
  func.func @transform_0(%arg0: i32, %arg1: i32) -> (i32, i32) {
    %c0_i32 = arith.constant 0 : i32
    return %arg0, %arg1 : i32, i32
  }
  func.func @transform_1(%arg0: i32, %arg1: i32) -> (i32, i32) {
    %c0_i32 = arith.constant 0 : i32
    %c0_i32_0 = arith.constant 0 : i32
    return %arg1, %c0_i32 : i32, i32
  }
  func.func @transform_2(%arg0: i32, %arg1: i32) -> (i32, i32) {
    %c0_i32 = arith.constant 0 : i32
    %c0_i32_0 = arith.constant 0 : i32
    %c0_i32_1 = arith.constant 0 : i32
    return %c0_i32, %c0_i32_0 : i32, i32
  }
  func.func @transform_3(%arg0: i32, %arg1: i32) -> (i32, i32) {
    %c0_i32 = arith.constant 0 : i32
    %c0_i32_0 = arith.constant 0 : i32
    return %arg0, %c0_i32 : i32, i32
  }
}

</mosaic_0001>

<llo_original>
// kernel: tpu_custom_call.1
$region0: #{tpu_custom_call.1}
  #allocation0 [shape = 'u32[]', space=smem, size = 0x4, offset = 0x4, fixed_abs, tag = 'smem constant byte address 0x4 - core index']
  #allocation1 [shape = 'u32[72,128]{1,0:T(1,128)}', space=vmem, size = 0x9000, scoped, tag = 'internal scratch']
  #allocation2 [shape = 'f32[16,64]{1,0:T(8,128)}', space=vmem, size = 0x2000, scoped, tag = 'scratch operand']
  %s0 = inlined_call_operand.hbm [shape: f32[16,32], index: 0, kind: input, shape index: {}]
  %s1 = inlined_call_operand.hbm [shape: f32[32,64], index: 1, kind: input, shape index: {}]
  %s2 = inlined_call_operand.vmem [shape: f32[1,64], index: 2, kind: input, shape index: {}]
  %s3 = inlined_call_operand.hbm [shape: f32[16,32], index: 3, kind: output, shape index: {}]
  %s4 = sld [smem:[#allocation0]]
  $region38: #{tpu_custom_call.1} parent=0
    _
  %s6 = ssub.s32 1, %s4
  %s7 = scalar_select 0, %s6, %s4
  $region1: #{tpu_custom_call.1} parent=0
    #allocation3 [shape = 'u8[8192]{0}', space=vmem, size = 0x2000, scoped, tag = 'input window, operand 0, single buffered']
    #allocation4 [shape = 's32[1]{0}', space=sflag, size = 0x4, scoped, tag = 'scoped memory for tpu_custom_call.1']
    #allocation5 [shape = 's32[1]{0}', space=sflag, size = 0x4, scoped, tag = 'scoped memory for tpu_custom_call.1']
    #allocation6 [shape = 'u8[16384]{0}', space=vmem, size = 0x4000, scoped, tag = 'input window, operand 1, single buffered']
    #allocation7 [shape = 's32[1]{0}', space=sflag, size = 0x4, scoped, tag = 'scoped memory for tpu_custom_call.1']
    #allocation8 [shape = 'u8[8192]{0}', space=vmem, size = 0x2000, scoped, tag = 'output window, operand 0, single buffered']
    %8 = vsyncpa [#allocation4], 0
    %9 = vsyncpa [#allocation7], 0
    %10 = vsyncpa [#allocation5], 0
    // Predicated region
    $region2: #{tpu_custom_call.1} parent=1 // pred_check
      _
    $region3: #{tpu_custom_call.1} parent=1 // pred_check_branch
      %12 = sbr.rel (0) target = $region5
    $region4: #{tpu_custom_call.1} parent=1 // pred_region
      %14 = vsyncadd [#allocation4], 0
      %s15 = sshll.u32 %s0, 4
      %s16 = int_to_ptr.hbm [resolvable:$true] %s15
      %s17 = sshll.u32 [#allocation3], 4
      %s18 = int_to_ptr.vmem [resolvable:$true] %s17
      %23 = dma.hbm_to_vmem [thread:$0]  %s16, 256, %s18, [#allocation4], 128, 128, 8
    $region5: #{tpu_custom_call.1} parent=1 // pred_fallthru
      _
    // Predicated region
    $region6: #{tpu_custom_call.1} parent=1 // pred_check
      _
    $region7: #{tpu_custom_call.1} parent=1 // pred_check_branch
      %25 = sbr.rel (0) target = $region9
    $region8: #{tpu_custom_call.1} parent=1 // pred_region
      %27 = vsyncadd [#allocation7], 0
      %s28 = sshll.u32 %s1, 4
      %s29 = int_to_ptr.hbm [resolvable:$true] %s28
      %s30 = sshll.u32 [#allocation6], 4
      %s31 = int_to_ptr.vmem [resolvable:$true] %s30
      %36 = dma.hbm_to_vmem [thread:$0]  %s29, 512, %s31, [#allocation7], 128, 128, 8
    $region9: #{tpu_custom_call.1} parent=1 // pred_fallthru
      _
    // Predicated region
    $region10: #{tpu_custom_call.1} parent=1 // pred_check
      _
    $region11: #{tpu_custom_call.1} parent=1 // pred_check_branch
      %38 = sbr.rel (0) target = $region13
    $region12: #{tpu_custom_call.1} parent=1 // pred_region
      _
    $region13: #{tpu_custom_call.1} parent=1 // pred_fallthru
      _
    // Predicated region
    $region14: #{tpu_custom_call.1} parent=1 // pred_check
      _
    $region15: #{tpu_custom_call.1} parent=1 // pred_check_branch
      %40 = sbr.rel (0) target = $region17
    $region16: #{tpu_custom_call.1} parent=1 // pred_region
      %42 = dma.done [#allocation4], 256
    $region17: #{tpu_custom_call.1} parent=1 // pred_fallthru
      _
    // Predicated region
    $region18: #{tpu_custom_call.1} parent=1 // pred_check
      _
    $region19: #{tpu_custom_call.1} parent=1 // pred_check_branch
      %44 = sbr.rel (0) target = $region21
    $region20: #{tpu_custom_call.1} parent=1 // pred_region
      %46 = dma.done [#allocation7], 512
    $region21: #{tpu_custom_call.1} parent=1 // pred_fallthru
      _
    %p47 = scmp.eq.s32.totalorder 0, 0
    // Predicated region
    $region22: #{tpu_custom_call.1} parent=1 // pred_check
      %p48 = pneg %p47
    $region23: #{tpu_custom_call.1} parent=1 // pred_check_branch
      %50 = sbr.rel (%p48) target = $region25
    $region24: #{tpu_custom_call.1} parent=1 // pred_region
      %vm51 = vcmask 523264
      %52 = vst.msk [vmem:[#allocation2] sm:$0xff] %vm51, 0.0
      %53 = vst.msk [vmem:[#allocation2 + $0x8] sm:$0xff] %vm51, 0.0
    $region25: #{tpu_custom_call.1} parent=1 // pred_fallthru
      _
    %v54 = vld [vmem:[#allocation2] sm:$0xff]
    %v55 = vld [vmem:[#allocation2 + $0x8] sm:$0xff]
    %v56 = vld [vmem:[#allocation3] sm:$0xff]
    %v57 = vld [vmem:[#allocation3 + $0x8] sm:$0xff]
    %v58 = vld [vmem:[#allocation6] sm:$0xff]
    %v59 = vld [vmem:[#allocation6 + $0x8] sm:$0xff]
    %v60 = vld [vmem:[#allocation6 + $0x10] sm:$0xff]
    %v61 = vld [vmem:[#allocation6 + $0x18] sm:$0xff]
    %vm62 = vcmask 261120
    %v64 = vsel %vm62, %v56, 0
    %v67 = vsel %vm62, %v57, 0
    %69 = vmatpush.msra.mxu0 0.0
    %70 = vmatpush.msra.mxu0 0.0
    %71 = vmatpush.msra.mxu0 0.0
    %72 = vmatpush.msra.mxu0 0.0
    %73 = vmatpush.msra.mxu0 0.0
    %74 = vmatpush.msra.mxu0 0.0
    %75 = vmatpush.msra.mxu0 0.0
    %76 = vmatpush.msra.mxu0 0.0
    %77 = vmatpush.msra.mxu0 0.0
    %78 = vmatpush.msra.mxu0 0.0
    %79 = vmatpush.msra.mxu0 0.0
    %80 = vmatpush.msra.mxu0 0.0
    %81 = vmatpush.msra.mxu0 %v61
    %82 = vmatpush.msra.mxu0 %v60
    %83 = vmatpush.msra.mxu0 %v59
    %84 = vmatpush.msra.mxu0 %v58
    %85 = vmatmul.f32.gmra.mxu0 %v64
    %v86 = vpop.f32.mrf.mxu0
    %v87 = vadd.f32 0.0, %v86
    %88 = vmatmul.f32.gmra.mxu0 %v67
    %v89 = vpop.f32.mrf.mxu0
    %v90 = vadd.f32 0.0, %v89
    %91 = vdwg.mxu0
    %v92 = vadd.f32 %v54, %v87
    %v93 = vadd.f32 %v55, %v90
    %vm94 = vcmask 523264
    %95 = vst.msk [vmem:[#allocation2] sm:$0xff] %vm94, %v92
    %96 = vst.msk [vmem:[#allocation2 + $0x8] sm:$0xff] %vm94, %v93
    // Predicated region
    $region26: #{tpu_custom_call.1} parent=1 // pred_check
      %p97 = pneg %p47
    $region27: #{tpu_custom_call.1} parent=1 // pred_check_branch
      %99 = sbr.rel (%p97) target = $region29
    $region28: #{tpu_custom_call.1} parent=1 // pred_region
      %v100 = vld [vmem:[#allocation2] sm:$0xff]
      %v101 = vld [vmem:[#allocation2 + $0x8] sm:$0xff]
      %v102 = vld [vmem:[%s2] sm:$0x1]
      %v104 = vperm.slane %v102, 0
      %v106 = vadd.f32 %v100, %v104
      %v107 = vadd.f32 %v101, %v104
      %v108 = vxor.u32 %v106, 2147483648
      %v109 = vxor.u32 %v107, 2147483648
      %v110 = vmul.f32 %v108, 1.442695
      %v111 = vpow.pop %v110
      %v112 = vmul.f32 %v109, 1.442695
      %v113 = vpow.pop %v112
      %v114 = vadd.f32 %v111, 1.0
      %v115 = vadd.f32 %v113, 1.0
      %v116 = vrcp.pop %v114
      %v117 = vmul.f32 %v114, %v116
      %v118 = vsub.f32 1.0, %v117
      %v119 = vmul.f32 %v116, %v118
      %v120 = vadd.f32 %v116, %v119
      %vm121 = vweird.f32 %v114
      %vm122 = vweird.f32 %v116
      %vm123 = vmor %vm121, %vm122
      %v124 = vsel %vm123, %v116, %v120
      %v125 = vand.u32 2147483647, %v114
      %vm126 = vcmp.eq.f32.partialorder %v125, 8.507059e+37
      %v127 = vand.u32 %v114, 2147483648
      %v128 = vor.u32 1.1754944e-38, %v127
      %v129 = vsel %vm126, %v128, %v124
      %v130 = vmul.f32 1.0, %v129
      %v131 = vrcp.pop %v115
      %v132 = vmul.f32 %v115, %v131
      %v133 = vsub.f32 1.0, %v132
      %v134 = vmul.f32 %v131, %v133
      %v135 = vadd.f32 %v131, %v134
      %vm136 = vweird.f32 %v115
      %vm137 = vweird.f32 %v131
      %vm138 = vmor %vm136, %vm137
      %v139 = vsel %vm138, %v131, %v135
      %v140 = vand.u32 2147483647, %v115
      %vm141 = vcmp.eq.f32.partialorder %v140, 8.507059e+37
      %v142 = vand.u32 %v115, 2147483648
      %v143 = vor.u32 1.1754944e-38, %v142
      %v144 = vsel %vm141, %v143, %v139
      %v145 = vmul.f32 1.0, %v144
      %v146 = vmul.f32 %v106, %v130
      %v147 = vmul.f32 %v107, %v145
      %150 = vrot.lane.b32.xlu0 %v106, 96
      %v151 = vpop.permute.xlu0 %150
      %152 = vrot.lane.b32.xlu0 %v107, 96
      %v153 = vpop.permute.xlu0 %152
      %v156 = vmul.f32 %v146, %v151
      %v157 = vmul.f32 %v147, %v153
      %158 = vst.msk [vmem:[#allocation8] sm:$0xff] %vm62, %v156
      %159 = vst.msk [vmem:[#allocation8 + $0x8] sm:$0xff] %vm62, %v157
    $region29: #{tpu_custom_call.1} parent=1 // pred_fallthru
      _
    // Predicated region
    $region30: #{tpu_custom_call.1} parent=1 // pred_check
      _
    $region31: #{tpu_custom_call.1} parent=1 // pred_check_branch
      %161 = sbr.rel (0) target = $region33
    $region32: #{tpu_custom_call.1} parent=1 // pred_region
      %163 = vsyncadd [#allocation5], 0
      %s164 = sshll.u32 [#allocation8], 4
      %s165 = int_to_ptr.vmem [resolvable:$true] %s164
      %s166 = sshll.u32 %s3, 4
      %s167 = int_to_ptr.hbm [resolvable:$true] %s166
      %172 = dma.vmem_to_hbm [thread:$0]  %s165, 256, %s167, [#allocation5], 128, 128, 8
    $region33: #{tpu_custom_call.1} parent=1 // pred_fallthru
      _
    // Predicated region
    $region34: #{tpu_custom_call.1} parent=1 // pred_check
      _
    $region35: #{tpu_custom_call.1} parent=1 // pred_check_branch
      %174 = sbr.rel (0) target = $region37
    $region36: #{tpu_custom_call.1} parent=1 // pred_region
      %176 = dma.done [#allocation5], 256
    $region37: #{tpu_custom_call.1} parent=1 // pred_fallthru
      _
    %177 = vsyncpa [#allocation4], 1
    %178 = vsyncpa [#allocation7], 1
    %179 = vsyncpa [#allocation5], 1

</llo_original>
